<compile_context>
chip_gen: v7x
topology: tpu7x:2x2x1
jax: 0.10.0
libtpu: 0.0.40
codegen_flags: <defaults>
</compile_context>

<pallas_src>
import jax
import jax.numpy as jnp
from jax.experimental import pallas as pl
from jax.experimental.pallas import tpu as pltpu

# Padded hidden sizes (lane multiples of 128).
H1_PAD = 512   # true 400
H2_PAD = 384   # true 300


def critic_kernel(x_ref, w1_ref, b1_ref, w2_ref, b2_ref, w3_ref, b3_ref, o_ref):
    # Layer 1: Linear + ReLU (bf16 operands, f32 MXU accumulate).
    h1 = jnp.dot(x_ref[...], w1_ref[...], preferred_element_type=jnp.float32)
    h1 = jnp.maximum(h1 + b1_ref[...], 0.0)

    # Layer 2: Linear + ReLU.
    h2 = jnp.dot(h1.astype(jnp.bfloat16), w2_ref[...],
                 preferred_element_type=jnp.float32)
    h2 = jnp.maximum(h2 + b2_ref[...], 0.0)

    # Layer 3 (out_features == 1): compute w3 @ h2^T so the result is already a
    # lane-dense (1, tile_b) row; add the scalar bias read from SMEM.
    out_row = jnp.einsum("oh,bh->ob", w3_ref[...], h2.astype(jnp.bfloat16),
                         preferred_element_type=jnp.float32)
    o_ref[...] = (out_row + b3_ref[0, 0])[None]          # (1, 1, tile_b)


def _choose_tile_b(batch):
    """Fewest grid steps for small B; >=2 parallel steps (v7x dual-TC) for big B."""
    b8 = ((batch + 7) // 8) * 8          # sublane-align
    if b8 <= 1024:
        return b8                        # single grid step
    return 512


@jax.jit
def critic_forward(x, w1, b1, w2, b2, w3, b3):
    """x: (B, obs+act) f32/bf16.  w1:(in,512) bf16, w2:(512,384) bf16,
    w3:(1,384) bf16 (all zero-padded), b1:(1,512) f32, b2:(1,384) f32,
    b3:(1,1) f32.  Returns (B, 1) f32."""
    B, d_in = x.shape
    tile_b = _choose_tile_b(B)
    n_tiles = -(-B // tile_b)
    B_pad = n_tiles * tile_b

    x = x.astype(jnp.bfloat16)           # halve x DMA bytes; no in-kernel cast
    if B_pad != B:
        x = jnp.pad(x, ((0, B_pad - B), (0, 0)))

    const2 = lambda b: (0, 0)            # weights/biases resident across tiles

    out = pl.pallas_call(
        critic_kernel,
        out_shape=jax.ShapeDtypeStruct((n_tiles, 1, tile_b), jnp.float32),
        grid=(n_tiles,),
        in_specs=[
            pl.BlockSpec((tile_b, d_in), lambda b: (b, 0)),            # x tile
            pl.BlockSpec((d_in, H1_PAD), const2),                      # w1
            pl.BlockSpec((1, H1_PAD), const2),                         # b1
            pl.BlockSpec((H1_PAD, H2_PAD), const2),                    # w2
            pl.BlockSpec((1, H2_PAD), const2),                         # b2
            pl.BlockSpec((1, H2_PAD), const2),                         # w3 row
            pl.BlockSpec((1, 1), lambda b: (0, 0),
                         memory_space=pltpu.MemorySpace.SMEM),         # b3 scalar
        ],
        out_specs=pl.BlockSpec((1, 1, tile_b), lambda b: (b, 0, 0)),   # lane-dense
        compiler_params=pltpu.CompilerParams(
            dimension_semantics=("parallel",)),
    )(x, w1, b1, w2, b2, w3, b3)

    return out.reshape(-1)[:B].reshape(B, 1)


def init_linear_params(key, in_dim, out_dim, pad_in, pad_out, w_dtype):
    """PyTorch nn.Linear default init U(-1/sqrt(in), 1/sqrt(in)); weight returned
    transposed to (in, out) and zero-padded to (pad_in, pad_out)."""
    kw, kb = jax.random.split(key)
    bound = 1.0 / jnp.sqrt(jnp.asarray(in_dim, jnp.float32))
    w = jax.random.uniform(kw, (in_dim, out_dim), jnp.float32, -bound, bound)
    b = jax.random.uniform(kb, (1, out_dim), jnp.float32, -bound, bound)
    w_p = jnp.zeros((pad_in, pad_out), jnp.float32).at[:in_dim, :out_dim].set(w)
    b_p = jnp.zeros((1, pad_out), jnp.float32).at[:, :out_dim].set(b)
    return w_p.astype(w_dtype), b_p


if __name__ == "__main__":
    # Reacher-like dims: observation_space_dim=11, action_space_dim=2.
    obs_dim, act_dim = 11, 2
    layer_1_dim, layer_2_dim = 400, 300
    batch = 32                                    # small demo batch -> grid=(1,)

    d_in = obs_dim + act_dim
    key = jax.random.PRNGKey(0)
    k_in, k1, k2, k3 = jax.random.split(key, 4)

    # Critic input is concat([state, action]) -> (batch, obs_dim + act_dim)
    x = jax.random.normal(k_in, (batch, d_in), jnp.float32)

    w1, b1 = init_linear_params(k1, d_in, layer_1_dim, d_in, H1_PAD, jnp.bfloat16)
    w2, b2 = init_linear_params(k2, layer_1_dim, layer_2_dim, H1_PAD, H2_PAD,
                                jnp.bfloat16)
    w3_col, b3 = init_linear_params(k3, layer_2_dim, 1, H2_PAD, 1, jnp.float32)
    w3 = w3_col.T.astype(jnp.bfloat16)            # (1, H2_PAD) row, bf16
    # b3 stays (1, 1) f32 (SMEM scalar)

    out = jax.block_until_ready(critic_forward(x, w1, b1, w2, b2, w3, b3))
    assert out.shape == (batch, 1)

    # Reference with the same bf16-rounded operands, f32 accumulate.
    xr = x.astype(jnp.bfloat16).astype(jnp.float32)
    h1 = jnp.maximum(xr @ w1.astype(jnp.float32) + b1, 0.0)
    h2 = jnp.maximum(
        h1.astype(jnp.bfloat16).astype(jnp.float32) @ w2.astype(jnp.float32) + b2,
        0.0)
    ref = h2.astype(jnp.bfloat16).astype(jnp.float32) @ w3.astype(jnp.float32).T + b3
    assert jnp.allclose(out, ref, atol=2e-3, rtol=2e-3), \
        float(jnp.max(jnp.abs(out - ref)))

    # Loose sanity check against full-f32 math (PyTorch parity modulo bf16).
    f1 = jnp.maximum(x @ w1.astype(jnp.float32) + b1, 0.0)
    f2 = jnp.maximum(f1 @ w2.astype(jnp.float32) + b2, 0.0)
    ref_f32 = f2 @ w3.astype(jnp.float32).T + b3
    assert jnp.allclose(out, ref_f32, atol=5e-2, rtol=5e-2)

    print("KERNEL_OK")
</pallas_src>

<mosaic_0001>
module attributes {stable_mosaic.version = 11 : i64} {
  func.func @critic_kernel(%arg0: i32, %arg1: memref<32x13xbf16, #tpu.memory_space<vmem>>, %arg2: memref<13x512xbf16, #tpu.memory_space<vmem>>, %arg3: memref<1x512xf32, #tpu.memory_space<vmem>>, %arg4: memref<512x384xbf16, #tpu.memory_space<vmem>>, %arg5: memref<1x384xf32, #tpu.memory_space<vmem>>, %arg6: memref<1x384xbf16, #tpu.memory_space<vmem>>, %arg7: memref<1x1xf32, #tpu.memory_space<smem>>, %arg8: memref<1x1x32xf32, #tpu.memory_space<vmem>>) attributes {dimension_semantics = [#tpu.dimension_semantics<parallel>], iteration_bounds = array<i64: 1>, scalar_prefetch = 0 : i64, scratch_operands = 0 : i64, tpu.core_type = #tpu.core_type<tc>, window_params = [{transform_indices = @transform_0, window_bounds = array<i64: 32, 13>}, {pipeline_mode = #tpu.pipeline_mode<synchronous>, transform_indices = @transform_1, window_bounds = array<i64: 13, 512>}, {pipeline_mode = #tpu.pipeline_mode<synchronous>, transform_indices = @transform_2, window_bounds = array<i64: 1, 512>}, {pipeline_mode = #tpu.pipeline_mode<synchronous>, transform_indices = @transform_3, window_bounds = array<i64: 512, 384>}, {pipeline_mode = #tpu.pipeline_mode<synchronous>, transform_indices = @transform_4, window_bounds = array<i64: 1, 384>}, {pipeline_mode = #tpu.pipeline_mode<synchronous>, transform_indices = @transform_5, window_bounds = array<i64: 1, 384>}, {transform_indices = @transform_6, window_bounds = array<i64: 1, 1>}, {transform_indices = @transform_7, window_bounds = array<i64: 1, 1, 32>}]} {
    %c0 = arith.constant 0 : index
    %c0_0 = arith.constant 0 : index
    %0 = vector.load %arg1[%c0, %c0_0] : memref<32x13xbf16, #tpu.memory_space<vmem>>, vector<32x13xbf16>
    %c0_1 = arith.constant 0 : index
    %c0_2 = arith.constant 0 : index
    %1 = vector.load %arg2[%c0_1, %c0_2] : memref<13x512xbf16, #tpu.memory_space<vmem>>, vector<13x512xbf16>
    %cst = arith.constant dense<0.000000e+00> : vector<32x512xf32>
    %2 = tpu.matmul %0, %1, %cst {dimension_numbers = #tpu.dot_dimension_numbers<[1], [0], [0], [1], [0, 0, 1, 1], [], []>} : vector<32x13xbf16>, vector<13x512xbf16>, vector<32x512xf32> -> vector<32x512xf32>
    %c0_3 = arith.constant 0 : index
    %c0_4 = arith.constant 0 : index
    %3 = vector.load %arg3[%c0_3, %c0_4] : memref<1x512xf32, #tpu.memory_space<vmem>>, vector<1x512xf32>
    %4 = vector.broadcast %3 : vector<1x512xf32> to vector<32x512xf32>
    %5 = arith.addf %2, %4 : vector<32x512xf32>
    %cst_5 = arith.constant 0.000000e+00 : f32
    %6 = vector.broadcast %cst_5 : f32 to vector<32x512xf32>
    %7 = arith.maximumf %5, %6 : vector<32x512xf32>
    %8 = arith.truncf %7 : vector<32x512xf32> to vector<32x512xbf16>
    %c0_6 = arith.constant 0 : index
    %c0_7 = arith.constant 0 : index
    %9 = vector.load %arg4[%c0_6, %c0_7] : memref<512x384xbf16, #tpu.memory_space<vmem>>, vector<512x384xbf16>
    %cst_8 = arith.constant dense<0.000000e+00> : vector<32x384xf32>
    %10 = tpu.matmul %8, %9, %cst_8 {dimension_numbers = #tpu.dot_dimension_numbers<[1], [0], [0], [1], [0, 0, 1, 1], [], []>} : vector<32x512xbf16>, vector<512x384xbf16>, vector<32x384xf32> -> vector<32x384xf32>
    %c0_9 = arith.constant 0 : index
    %c0_10 = arith.constant 0 : index
    %11 = vector.load %arg5[%c0_9, %c0_10] : memref<1x384xf32, #tpu.memory_space<vmem>>, vector<1x384xf32>
    %12 = vector.broadcast %11 : vector<1x384xf32> to vector<32x384xf32>
    %13 = arith.addf %10, %12 : vector<32x384xf32>
    %cst_11 = arith.constant 0.000000e+00 : f32
    %14 = vector.broadcast %cst_11 : f32 to vector<32x384xf32>
    %15 = arith.maximumf %13, %14 : vector<32x384xf32>
    %c0_12 = arith.constant 0 : index
    %c0_13 = arith.constant 0 : index
    %16 = vector.load %arg6[%c0_12, %c0_13] : memref<1x384xbf16, #tpu.memory_space<vmem>>, vector<1x384xbf16>
    %17 = arith.truncf %15 : vector<32x384xf32> to vector<32x384xbf16>
    "tpu.trace_start"() <{level = 10 : i32, message = "oh,bh->ob"}> : () -> ()
    %cst_14 = arith.constant dense<0.000000e+00> : vector<1x32xf32>
    %18 = tpu.matmul %16, %17, %cst_14 {dimension_numbers = #tpu.dot_dimension_numbers<[1], [1], [0], [0], [0, 0, 1, 0], [], []>} : vector<1x384xbf16>, vector<32x384xbf16>, vector<1x32xf32> -> vector<1x32xf32>
    "tpu.trace_stop"() : () -> ()
    %c0_15 = arith.constant 0 : index
    %c0_16 = arith.constant 0 : index
    %19 = memref.load %arg7[%c0_15, %c0_16] : memref<1x1xf32, #tpu.memory_space<smem>>
    %20 = vector.broadcast %19 : f32 to vector<1x32xf32>
    %21 = arith.addf %18, %20 : vector<1x32xf32>
    %22 = vector.shape_cast %21 : vector<1x32xf32> to vector<1x1x32xf32>
    %c0_17 = arith.constant 0 : index
    %c0_18 = arith.constant 0 : index
    %c0_19 = arith.constant 0 : index
    %23 = vector.load %arg8[%c0_17, %c0_18, %c0_19] : memref<1x1x32xf32, #tpu.memory_space<vmem>>, vector<1x1x32xf32>
    tpu.vector_store %arg8[%c0_17, %c0_18, %c0_19], %22 {strides = array<i32>} : memref<1x1x32xf32, #tpu.memory_space<vmem>>, vector<1x1x32xf32>,
    return
  }
  func.func @transform_0(%arg0: i32) -> (i32, i32) {
    %c0_i32 = arith.constant 0 : i32
    %c0_i32_0 = arith.constant 0 : i32
    return %arg0, %c0_i32 : i32, i32
  }
  func.func @transform_1(%arg0: i32) -> (i32, i32) {
    %c0_i32 = arith.constant 0 : i32
    %c0_i32_0 = arith.constant 0 : i32
    %c0_i32_1 = arith.constant 0 : i32
    return %c0_i32, %c0_i32_0 : i32, i32
  }
  func.func @transform_2(%arg0: i32) -> (i32, i32) {
    %c0_i32 = arith.constant 0 : i32
    %c0_i32_0 = arith.constant 0 : i32
    %c0_i32_1 = arith.constant 0 : i32
    return %c0_i32, %c0_i32_0 : i32, i32
  }
  func.func @transform_3(%arg0: i32) -> (i32, i32) {
    %c0_i32 = arith.constant 0 : i32
    %c0_i32_0 = arith.constant 0 : i32
    %c0_i32_1 = arith.constant 0 : i32
    return %c0_i32, %c0_i32_0 : i32, i32
  }
  func.func @transform_4(%arg0: i32) -> (i32, i32) {
    %c0_i32 = arith.constant 0 : i32
    %c0_i32_0 = arith.constant 0 : i32
    %c0_i32_1 = arith.constant 0 : i32
    return %c0_i32, %c0_i32_0 : i32, i32
  }
  func.func @transform_5(%arg0: i32) -> (i32, i32) {
    %c0_i32 = arith.constant 0 : i32
    %c0_i32_0 = arith.constant 0 : i32
    %c0_i32_1 = arith.constant 0 : i32
    return %c0_i32, %c0_i32_0 : i32, i32
  }
  func.func @transform_6(%arg0: i32) -> (i32, i32) {
    %c0_i32 = arith.constant 0 : i32
    %c0_i32_0 = arith.constant 0 : i32
    %c0_i32_1 = arith.constant 0 : i32
    return %c0_i32, %c0_i32_0 : i32, i32
  }
  func.func @transform_7(%arg0: i32) -> (i32, i32, i32) {
    %c0_i32 = arith.constant 0 : i32
    %c0_i32_0 = arith.constant 0 : i32
    %c0_i32_1 = arith.constant 0 : i32
    return %arg0, %c0_i32, %c0_i32_0 : i32, i32, i32
  }
}

</mosaic_0001>

<llo_original>
// kernel: critic_forward.1
$region0: #{critic_forward.1}
  #allocation0 [shape = 'u32[]', space=smem, size = 0x4, offset = 0x4, fixed_abs, tag = 'smem constant byte address 0x4 - core index']
  #allocation1 [shape = 'u32[144,128]{1,0:T(1,128)}', space=vmem, size = 0x12000, scoped, tag = 'internal scratch']
  #allocation2 [shape = 'f32[1,1]{1,0:T(1,128)S(6)}', space=smem, size = 0x200, scoped, tag = 'scoped memory for critic_forward.1']
  %s0 = inlined_call_operand.vmem [shape: bf16[32,13], index: 0, kind: input, shape index: {}]
  %s1 = inlined_call_operand.vmem [shape: bf16[13,512], index: 1, kind: input, shape index: {}]
  %s2 = inlined_call_operand.vmem [shape: f32[1,512], index: 2, kind: input, shape index: {}]
  %s3 = inlined_call_operand.hbm [shape: bf16[512,384], index: 3, kind: input, shape index: {}]
  %s4 = inlined_call_operand.vmem [shape: f32[1,384], index: 4, kind: input, shape index: {}]
  %s5 = inlined_call_operand.vmem [shape: bf16[1,384], index: 5, kind: input, shape index: {}]
  %s6 = inlined_call_operand.<no memory space> [shape: f32[1,1], index: 6, kind: input, shape index: {}]
  %s7 = inlined_call_operand.hbm [shape: f32[1,1,32], index: 7, kind: output, shape index: {}]
  %s8 = sld [smem:[#allocation0]]
  $region42: #{critic_forward.1} parent=0
    _
  %s10 = ssub.s32 1, %s8
  %s11 = scalar_select 0, %s10, %s8
  %12 = sst [smem:[#allocation2]] %s6
  $region1: #{critic_forward.1} parent=0
    #allocation3 [shape = 'u8[393216]{0}', space=vmem, size = 0x60000, scoped, tag = 'input window, operand 3, single buffered']
    #allocation4 [shape = 's32[1]{0}', space=sflag, size = 0x4, scoped, tag = 'scoped memory for critic_forward.1']
    #allocation5 [shape = 's32[1]{0}', space=sflag, size = 0x4, scoped, tag = 'scoped memory for critic_forward.1']
    #allocation6 [shape = 'u8[512]{0}', space=vmem, size = 0x400, scoped, tag = 'output window, operand 0, single buffered']
    %13 = vsyncpa [#allocation4], 0
    %14 = vsyncpa [#allocation5], 0
    // Predicated region
    $region2: #{critic_forward.1} parent=1 // pred_check
      _
    $region3: #{critic_forward.1} parent=1 // pred_check_branch
      %16 = sbr.rel (0) target = $region5
    $region4: #{critic_forward.1} parent=1 // pred_region
      _
    $region5: #{critic_forward.1} parent=1 // pred_fallthru
      _
    // Predicated region
    $region6: #{critic_forward.1} parent=1 // pred_check
      _
    $region7: #{critic_forward.1} parent=1 // pred_check_branch
      %18 = sbr.rel (0) target = $region9
    $region8: #{critic_forward.1} parent=1 // pred_region
      _
    $region9: #{critic_forward.1} parent=1 // pred_fallthru
      _
    // Predicated region
    $region10: #{critic_forward.1} parent=1 // pred_check
      _
    $region11: #{critic_forward.1} parent=1 // pred_check_branch
      %20 = sbr.rel (0) target = $region13
    $region12: #{critic_forward.1} parent=1 // pred_region
      _
    $region13: #{critic_forward.1} parent=1 // pred_fallthru
      _
    // Predicated region
    $region14: #{critic_forward.1} parent=1 // pred_check
      _
    $region15: #{critic_forward.1} parent=1 // pred_check_branch
      %22 = sbr.rel (0) target = $region17
    $region16: #{critic_forward.1} parent=1 // pred_region
      %s24 = ssub.s32 12288, 12288
      %25 = vsyncadd [#allocation4], %s24
      %s26 = sshll.u32 [#allocation3], 4
      %s27 = int_to_ptr.vmem [resolvable:$true] %s26
      %32 = dma.hbm_to_vmem [thread:$0]  %s3, 12288, %s27, [#allocation4], 192, 192, 12
    $region17: #{critic_forward.1} parent=1 // pred_fallthru
      _
    // Predicated region
    $region18: #{critic_forward.1} parent=1 // pred_check
      _
    $region19: #{critic_forward.1} parent=1 // pred_check_branch
      %34 = sbr.rel (0) target = $region21
    $region20: #{critic_forward.1} parent=1 // pred_region
      _
    $region21: #{critic_forward.1} parent=1 // pred_fallthru
      _
    // Predicated region
    $region22: #{critic_forward.1} parent=1 // pred_check
      _
    $region23: #{critic_forward.1} parent=1 // pred_check_branch
      %36 = sbr.rel (0) target = $region25
    $region24: #{critic_forward.1} parent=1 // pred_region
      _
    $region25: #{critic_forward.1} parent=1 // pred_fallthru
      _
    // Predicated region
    $region26: #{critic_forward.1} parent=1 // pred_check
      _
    $region27: #{critic_forward.1} parent=1 // pred_check_branch
      %38 = sbr.rel (0) target = $region29
    $region28: #{critic_forward.1} parent=1 // pred_region
      _
    $region29: #{critic_forward.1} parent=1 // pred_fallthru
      _
    // Predicated region
    $region30: #{critic_forward.1} parent=1 // pred_check
      _
    $region31: #{critic_forward.1} parent=1 // pred_check_branch
      %40 = sbr.rel (0) target = $region33
    $region32: #{critic_forward.1} parent=1 // pred_region
      %41 = dma.done [#allocation4], 12288
    $region33: #{critic_forward.1} parent=1 // pred_fallthru
      _
    %v43 = vld [vmem:[%s0] sm:$0xf]
    %v44 = vld [vmem:[%s0 + $0x4] sm:$0xf]
    %v45 = vld [vmem:[%s0 + $0x8] sm:$0xf]
    %v46 = vld [vmem:[%s0 + $0xc] sm:$0xf]
    %v47 = vld [vmem:[%s1] sm:$0xff]
    %v48 = vld [vmem:[%s1 + $0x8] sm:$0xff]
    %v49 = vld [vmem:[%s1 + $0x10] sm:$0x77]
    %v50 = vld [vmem:[%s1 + $0x18] sm:$0x77]
    %v51 = vld [vmem:[%s2] sm:$0xf]
    %v53 = vlaneseq
    %v54 = vshrl.u32 %v53, 7
    %v55 = vsub.s32 0, %v54
    %v56 = vrot.slane %v51, %v55
    %v57 = vlaneseq
    %v58 = vshrl.u32 %v57, 7
    %v59 = vsub.s32 1, %v58
    %v60 = vrot.slane %v51, %v59
    %v61 = vlaneseq
    %v62 = vshrl.u32 %v61, 7
    %v63 = vsub.s32 2, %v62
    %v64 = vrot.slane %v51, %v63
    %v65 = vlaneseq
    %v66 = vshrl.u32 %v65, 7
    %v67 = vsub.s32 3, %v66
    %v68 = vrot.slane %v51, %v67
    %v77 = vunpack.c.l.b16 %v43
    %v78 = vunpack.c.l.b16 %v44
    %v79 = vunpack.c.l.b16 %v45
    %v80 = vunpack.c.l.b16 %v46
    %v81 = vpack.c.b16 %v78, %v77
    %v82 = vpack.c.b16 %v80, %v79
    %v87 = vunpack.c.l.b16 %v47
    %v88 = vunpack.c.h.b16 %v47
    %v89 = vunpack.c.l.b16 %v48
    %v90 = vunpack.c.h.b16 %v48
    %v91 = vunpack.c.l.b16 %v49
    %v92 = vunpack.c.h.b16 %v49
    %v93 = vunpack.c.l.b16 %v50
    %v94 = vunpack.c.h.b16 %v50
    %v95 = vpack.c.b16 %v91, %v87
    %v96 = vpack.c.b16 %v92, %v88
    %v97 = vpack.c.b16 %v93, %v89
    %v98 = vpack.c.b16 %v94, %v90
    %vm99 = vcmask 105472
    %v101 = vsel %vm99, %v81, 0
    %v104 = vsel %vm99, %v82, 0
    %vm106 = vcmask 1045504
    %vm107 = vcmask 1046528
    %v108 = vsel %vm106, 4294967295, 65535
    %v109 = vsel %vm107, %v108, 0
    %v111 = vand.u32 %v95, %v109
    %v114 = vand.u32 %v96, %v109
    %v117 = vand.u32 %v97, %v109
    %v120 = vand.u32 %v98, %v109
    %122 = vmatprep.subr.bf16.mxu0 %v114
    %123 = vmatpush1.bf16.msra.mxu0 %v111
    %124 = vmatprep.subr.bf16.mxu0 0
    %125 = vmatpush1.bf16.msra.mxu0 0
    %126 = vmatprep.subr.bf16.mxu0 0
    %127 = vmatpush1.bf16.msra.mxu0 0
    %128 = vmatprep.subr.bf16.mxu0 0
    %129 = vmatpush1.bf16.msra.mxu0 0
    %130 = vmatprep.subr.bf16.mxu0 0
    %131 = vmatpush1.bf16.msra.mxu0 0
    %132 = vmatprep.subr.bf16.mxu0 0
    %133 = vmatpush1.bf16.msra.mxu0 0
    %134 = vmatprep.subr.bf16.mxu0 0
    %135 = vmatpush1.bf16.msra.mxu0 0
    %136 = vmatprep.subr.bf16.mxu0 0
    %137 = vmatpush1.bf16.msra.mxu0 0
    %138 = vmatprep.subr.bf16.mxu0 0
    %139 = vmatpush1.bf16.msra.mxu0 0
    %140 = vmatprep.subr.bf16.mxu0 0
    %141 = vmatpush1.bf16.msra.mxu0 0
    %142 = vmatprep.subr.bf16.mxu0 0
    %143 = vmatpush1.bf16.msra.mxu0 0
    %144 = vmatprep.subr.bf16.mxu0 0
    %145 = vmatpush1.bf16.msra.mxu0 0
    %146 = vmatprep.subr.bf16.mxu0 0
    %147 = vmatpush1.bf16.msra.mxu0 0
    %148 = vmatprep.subr.bf16.mxu0 0
    %149 = vmatpush1.bf16.msra.mxu0 0
    %150 = vmatprep.subr.bf16.mxu0 0
    %151 = vmatpush1.bf16.msra.mxu0 0
    %152 = vmatprep.subr.bf16.mxu0 0
    %153 = vmatpush1.bf16.msra.mxu0 0
    %154 = vmatprep.mubr.bf16.mxu0 0
    %155 = vmatmul.mubr.bf16.gmra.mrb[0].mxu0 %v101
    %v156 = vpop.f32.mrb[0].mxu0
    %v157 = vadd.f32 %v56, %v156
    %v158 = vpop.f32.mrb[0].mxu0
    %v159 = vadd.f32 %v60, %v158
    %v160 = vpop.f32.mrb[0].mxu0
    %v161 = vadd.f32 %v56, %v160
    %v162 = vpop.f32.mrb[0].mxu0
    %v163 = vadd.f32 %v60, %v162
    %164 = vmatprep.mubr.bf16.mxu0 0
    %165 = vmatmul.mubr.bf16.gmra.mrb[0].mxu0 %v104
    %v166 = vpop.f32.mrb[0].mxu0
    %v167 = vadd.f32 %v56, %v166
    %v168 = vpop.f32.mrb[0].mxu0
    %v169 = vadd.f32 %v60, %v168
    %v170 = vpop.f32.mrb[0].mxu0
    %v171 = vadd.f32 %v56, %v170
    %v172 = vpop.f32.mrb[0].mxu0
    %v173 = vadd.f32 %v60, %v172
    %174 = vdwg.mxu0
    %175 = vmatprep.subr.bf16.mxu0 %v120
    %176 = vmatpush1.bf16.msra.mxu0 %v117
    %177 = vmatprep.subr.bf16.mxu0 0
    %178 = vmatpush1.bf16.msra.mxu0 0
    %179 = vmatprep.subr.bf16.mxu0 0
    %180 = vmatpush1.bf16.msra.mxu0 0
    %181 = vmatprep.subr.bf16.mxu0 0
    %182 = vmatpush1.bf16.msra.mxu0 0
    %183 = vmatprep.subr.bf16.mxu0 0
    %184 = vmatpush1.bf16.msra.mxu0 0
    %185 = vmatprep.subr.bf16.mxu0 0
    %186 = vmatpush1.bf16.msra.mxu0 0
    %187 = vmatprep.subr.bf16.mxu0 0
    %188 = vmatpush1.bf16.msra.mxu0 0
    %189 = vmatprep.subr.bf16.mxu0 0
    %190 = vmatpush1.bf16.msra.mxu0 0
    %191 = vmatprep.subr.bf16.mxu0 0
    %192 = vmatpush1.bf16.msra.mxu0 0
    %193 = vmatprep.subr.bf16.mxu0 0
    %194 = vmatpush1.bf16.msra.mxu0 0
    %195 = vmatprep.subr.bf16.mxu0 0
    %196 = vmatpush1.bf16.msra.mxu0 0
    %197 = vmatprep.subr.bf16.mxu0 0
    %198 = vmatpush1.bf16.msra.mxu0 0
    %199 = vmatprep.subr.bf16.mxu0 0
    %200 = vmatpush1.bf16.msra.mxu0 0
    %201 = vmatprep.subr.bf16.mxu0 0
    %202 = vmatpush1.bf16.msra.mxu0 0
    %203 = vmatprep.subr.bf16.mxu0 0
    %204 = vmatpush1.bf16.msra.mxu0 0
    %205 = vmatprep.subr.bf16.mxu0 0
    %206 = vmatpush1.bf16.msra.mxu0 0
    %207 = vmatprep.mubr.bf16.mxu0 0
    %208 = vmatmul.mubr.bf16.gmra.mrb[0].mxu0 %v101
    %v209 = vpop.f32.mrb[0].mxu0
    %v210 = vadd.f32 %v64, %v209
    %v211 = vpop.f32.mrb[0].mxu0
    %v212 = vadd.f32 %v68, %v211
    %v213 = vpop.f32.mrb[0].mxu0
    %v214 = vadd.f32 %v64, %v213
    %v215 = vpop.f32.mrb[0].mxu0
    %v216 = vadd.f32 %v68, %v215
    %217 = vmatprep.mubr.bf16.mxu0 0
    %218 = vmatmul.mubr.bf16.gmra.mrb[0].mxu0 %v104
    %v219 = vpop.f32.mrb[0].mxu0
    %v220 = vadd.f32 %v64, %v219
    %v221 = vpop.f32.mrb[0].mxu0
    %v222 = vadd.f32 %v68, %v221
    %v223 = vpop.f32.mrb[0].mxu0
    %v224 = vadd.f32 %v64, %v223
    %v225 = vpop.f32.mrb[0].mxu0
    %v226 = vadd.f32 %v68, %v225
    %227 = vdwg.mxu0
    %v228 = vmax.f32 %v157, 0.0
    %v229 = vmax.f32 %v159, 0.0
    %v230 = vmax.f32 %v210, 0.0
    %v231 = vmax.f32 %v212, 0.0
    %v232 = vmax.f32 %v161, 0.0
    %v233 = vmax.f32 %v163, 0.0
    %v234 = vmax.f32 %v214, 0.0
    %v235 = vmax.f32 %v216, 0.0
    %v236 = vmax.f32 %v167, 0.0
    %v237 = vmax.f32 %v169, 0.0
    %v238 = vmax.f32 %v220, 0.0
    %v239 = vmax.f32 %v222, 0.0
    %v240 = vmax.f32 %v171, 0.0
    %v241 = vmax.f32 %v173, 0.0
    %v242 = vmax.f32 %v224, 0.0
    %v243 = vmax.f32 %v226, 0.0
    %v244 = vpack.c.bf16 %v232, %v228
    %v245 = vpack.c.bf16 %v233, %v229
    %v246 = vpack.c.bf16 %v234, %v230
    %v247 = vpack.c.bf16 %v235, %v231
    %v248 = vpack.c.bf16 %v240, %v236
    %v249 = vpack.c.bf16 %v241, %v237
    %v250 = vpack.c.bf16 %v242, %v238
    %v251 = vpack.c.bf16 %v243, %v239
    %v252 = vld [vmem:[#allocation3] sm:$0xff]
    %v253 = vld [vmem:[#allocation3 + $0x8] sm:$0xf]
    %v254 = vld [vmem:[#allocation3 + $0xc] sm:$0xff]
    %v255 = vld [vmem:[#allocation3 + $0x14] sm:$0xf]
    %v256 = vld [vmem:[#allocation3 + $0x18] sm:$0xff]
    %v257 = vld [vmem:[#allocation3 + $0x20] sm:$0xf]
    %v258 = vld [vmem:[#allocation3 + $0x24] sm:$0xff]
    %v259 = vld [vmem:[#allocation3 + $0x2c] sm:$0xf]
    %v260 = vld [vmem:[#allocation3 + $0x30] sm:$0xff]
    %v261 = vld [vmem:[#allocation3 + $0x38] sm:$0xf]
    %v262 = vld [vmem:[#allocation3 + $0x3c] sm:$0xff]
    %v263 = vld [vmem:[#allocation3 + $0x44] sm:$0xf]
    %v264 = vld [vmem:[#allocation3 + $0x48] sm:$0xff]
    %v265 = vld [vmem:[#allocation3 + $0x50] sm:$0xf]
    %v266 = vld [vmem:[#allocation3 + $0x54] sm:$0xff]
    %v267 = vld [vmem:[#allocation3 + $0x5c] sm:$0xf]
    %v268 = vld [vmem:[#allocation3 + $0x60] sm:$0xff]
    %v269 = vld [vmem:[#allocation3 + $0x68] sm:$0xf]
    %v270 = vld [vmem:[#allocation3 + $0x6c] sm:$0xff]
    %v271 = vld [vmem:[#allocation3 + $0x74] sm:$0xf]
    %v272 = vld [vmem:[#allocation3 + $0x78] sm:$0xff]
    %v273 = vld [vmem:[#allocation3 + $0x80] sm:$0xf]
    %v274 = vld [vmem:[#allocation3 + $0x84] sm:$0xff]
    %v275 = vld [vmem:[#allocation3 + $0x8c] sm:$0xf]
    %v276 = vld [vmem:[#allocation3 + $0x90] sm:$0xff]
    %v277 = vld [vmem:[#allocation3 + $0x98] sm:$0xf]
    %v278 = vld [vmem:[#allocation3 + $0x9c] sm:$0xff]
    %v279 = vld [vmem:[#allocation3 + $0xa4] sm:$0xf]
    %v280 = vld [vmem:[#allocation3 + $0xa8] sm:$0xff]
    %v281 = vld [vmem:[#allocation3 + $0xb0] sm:$0xf]
    %v282 = vld [vmem:[#allocation3 + $0xb4] sm:$0xff]
    %v283 = vld [vmem:[#allocation3 + $0xbc] sm:$0xf]
    %v284 = vld [vmem:[#allocation3 + $0xc0] sm:$0xff]
    %v285 = vld [vmem:[#allocation3 + $0xc8] sm:$0xf]
    %v286 = vld [vmem:[#allocation3 + $0xcc] sm:$0xff]
    %v287 = vld [vmem:[#allocation3 + $0xd4] sm:$0xf]
    %v288 = vld [vmem:[#allocation3 + $0xd8] sm:$0xff]
    %v289 = vld [vmem:[#allocation3 + $0xe0] sm:$0xf]
    %v290 = vld [vmem:[#allocation3 + $0xe4] sm:$0xff]
    %v291 = vld [vmem:[#allocation3 + $0xec] sm:$0xf]
    %v292 = vld [vmem:[#allocation3 + $0xf0] sm:$0xff]
    %v293 = vld [vmem:[#allocation3 + $0xf8] sm:$0xf]
    %v294 = vld [vmem:[#allocation3 + $0xfc] sm:$0xff]
    %v295 = vld [vmem:[#allocation3 + $0x104] sm:$0xf]
    %v296 = vld [vmem:[#allocation3 + $0x108] sm:$0xff]
    %v297 = vld [vmem:[#allocation3 + $0x110] sm:$0xf]
    %v298 = vld [vmem:[#allocation3 + $0x114] sm:$0xff]
    %v299 = vld [vmem:[#allocation3 + $0x11c] sm:$0xf]
    %v300 = vld [vmem:[#allocation3 + $0x120] sm:$0xff]
    %v301 = vld [vmem:[#allocation3 + $0x128] sm:$0xf]
    %v302 = vld [vmem:[#allocation3 + $0x12c] sm:$0xff]
    %v303 = vld [vmem:[#allocation3 + $0x134] sm:$0xf]
    %v304 = vld [vmem:[#allocation3 + $0x138] sm:$0xff]
    %v305 = vld [vmem:[#allocation3 + $0x140] sm:$0xf]
    %v306 = vld [vmem:[#allocation3 + $0x144] sm:$0xff]
    %v307 = vld [vmem:[#allocation3 + $0x14c] sm:$0xf]
    %v308 = vld [vmem:[#allocation3 + $0x150] sm:$0xff]
    %v309 = vld [vmem:[#allocation3 + $0x158] sm:$0xf]
    %v310 = vld [vmem:[#allocation3 + $0x15c] sm:$0xff]
    %v311 = vld [vmem:[#allocation3 + $0x164] sm:$0xf]
    %v312 = vld [vmem:[#allocation3 + $0x168] sm:$0xff]
    %v313 = vld [vmem:[#allocation3 + $0x170] sm:$0xf]
    %v314 = vld [vmem:[#allocation3 + $0x174] sm:$0xff]
    %v315 = vld [vmem:[#allocation3 + $0x17c] sm:$0xf]
    %v316 = vld [vmem:[#allocation3 + $0x180] sm:$0xff]
    %v317 = vld [vmem:[#allocation3 + $0x188] sm:$0xf]
    %v318 = vld [vmem:[#allocation3 + $0x18c] sm:$0xff]
    %v319 = vld [vmem:[#allocation3 + $0x194] sm:$0xf]
    %v320 = vld [vmem:[#allocation3 + $0x198] sm:$0xff]
    %v321 = vld [vmem:[#allocation3 + $0x1a0] sm:$0xf]
    %v322 = vld [vmem:[#allocation3 + $0x1a4] sm:$0xff]
    %v323 = vld [vmem:[#allocation3 + $0x1ac] sm:$0xf]
    %v324 = vld [vmem:[#allocation3 + $0x1b0] sm:$0xff]
    %v325 = vld [vmem:[#allocation3 + $0x1b8] sm:$0xf]
    %v326 = vld [vmem:[#allocation3 + $0x1bc] sm:$0xff]
    %v327 = vld [vmem:[#allocation3 + $0x1c4] sm:$0xf]
    %v328 = vld [vmem:[#allocation3 + $0x1c8] sm:$0xff]
    %v329 = vld [vmem:[#allocation3 + $0x1d0] sm:$0xf]
    %v330 = vld [vmem:[#allocation3 + $0x1d4] sm:$0xff]
    %v331 = vld [vmem:[#allocation3 + $0x1dc] sm:$0xf]
    %v332 = vld [vmem:[#allocation3 + $0x1e0] sm:$0xff]
    %v333 = vld [vmem:[#allocation3 + $0x1e8] sm:$0xf]
    %v334 = vld [vmem:[#allocation3 + $0x1ec] sm:$0xff]
    %v335 = vld [vmem:[#allocation3 + $0x1f4] sm:$0xf]
    %v336 = vld [vmem:[#allocation3 + $0x1f8] sm:$0xff]
    %v337 = vld [vmem:[#allocation3 + $0x200] sm:$0xf]
    %v338 = vld [vmem:[#allocation3 + $0x204] sm:$0xff]
    %v339 = vld [vmem:[#allocation3 + $0x20c] sm:$0xf]
    %v340 = vld [vmem:[#allocation3 + $0x210] sm:$0xff]
    %v341 = vld [vmem:[#allocation3 + $0x218] sm:$0xf]
    %v342 = vld [vmem:[#allocation3 + $0x21c] sm:$0xff]
    %v343 = vld [vmem:[#allocation3 + $0x224] sm:$0xf]
    %v344 = vld [vmem:[#allocation3 + $0x228] sm:$0xff]
    %v345 = vld [vmem:[#allocation3 + $0x230] sm:$0xf]
    %v346 = vld [vmem:[#allocation3 + $0x234] sm:$0xff]
    %v347 = vld [vmem:[#allocation3 + $0x23c] sm:$0xf]
    %v348 = vld [vmem:[#allocation3 + $0x240] sm:$0xff]
    %v349 = vld [vmem:[#allocation3 + $0x248] sm:$0xf]
    %v350 = vld [vmem:[#allocation3 + $0x24c] sm:$0xff]
    %v351 = vld [vmem:[#allocation3 + $0x254] sm:$0xf]
    %v352 = vld [vmem:[#allocation3 + $0x258] sm:$0xff]
    %v353 = vld [vmem:[#allocation3 + $0x260] sm:$0xf]
    %v354 = vld [vmem:[#allocation3 + $0x264] sm:$0xff]
    %v355 = vld [vmem:[#allocation3 + $0x26c] sm:$0xf]
    %v356 = vld [vmem:[#allocation3 + $0x270] sm:$0xff]
    %v357 = vld [vmem:[#allocation3 + $0x278] sm:$0xf]
    %v358 = vld [vmem:[#allocation3 + $0x27c] sm:$0xff]
    %v359 = vld [vmem:[#allocation3 + $0x284] sm:$0xf]
    %v360 = vld [vmem:[#allocation3 + $0x288] sm:$0xff]
    %v361 = vld [vmem:[#allocation3 + $0x290] sm:$0xf]
    %v362 = vld [vmem:[#allocation3 + $0x294] sm:$0xff]
    %v363 = vld [vmem:[#allocation3 + $0x29c] sm:$0xf]
    %v364 = vld [vmem:[#allocation3 + $0x2a0] sm:$0xff]
    %v365 = vld [vmem:[#allocation3 + $0x2a8] sm:$0xf]
    %v366 = vld [vmem:[#allocation3 + $0x2ac] sm:$0xff]
    %v367 = vld [vmem:[#allocation3 + $0x2b4] sm:$0xf]
    %v368 = vld [vmem:[#allocation3 + $0x2b8] sm:$0xff]
    %v369 = vld [vmem:[#allocation3 + $0x2c0] sm:$0xf]
    %v370 = vld [vmem:[#allocation3 + $0x2c4] sm:$0xff]
    %v371 = vld [vmem:[#allocation3 + $0x2cc] sm:$0xf]
    %v372 = vld [vmem:[#allocation3 + $0x2d0] sm:$0xff]
    %v373 = vld [vmem:[#allocation3 + $0x2d8] sm:$0xf]
    %v374 = vld [vmem:[#allocation3 + $0x2dc] sm:$0xff]
    %v375 = vld [vmem:[#allocation3 + $0x2e4] sm:$0xf]
    %v376 = vld [vmem:[#allocation3 + $0x2e8] sm:$0xff]
    %v377 = vld [vmem:[#allocation3 + $0x2f0] sm:$0xf]
    %v378 = vld [vmem:[#allocation3 + $0x2f4] sm:$0xff]
    %v379 = vld [vmem:[#allocation3 + $0x2fc] sm:$0xf]
    %v380 = vld [vmem:[%s4] sm:$0x7]
    %v382 = vlaneseq
    %v383 = vshrl.u32 %v382, 7
    %v384 = vsub.s32 0, %v383
    %v385 = vrot.slane %v380, %v384
    %v386 = vlaneseq
    %v387 = vshrl.u32 %v386, 7
    %v388 = vsub.s32 1, %v387
    %v389 = vrot.slane %v380, %v388
    %v390 = vlaneseq
    %v391 = vshrl.u32 %v390, 7
    %v392 = vsub.s32 2, %v391
    %v393 = vrot.slane %v380, %v392
    %v525 = vunpack.c.l.b16 %v252
    %v526 = vunpack.c.h.b16 %v252
    %v527 = vunpack.c.l.b16 %v253
    %v528 = vunpack.c.l.b16 %v254
    %v529 = vunpack.c.h.b16 %v254
    %v530 = vunpack.c.l.b16 %v255
    %v531 = vunpack.c.l.b16 %v256
    %v532 = vunpack.c.h.b16 %v256
    %v533 = vunpack.c.l.b16 %v257
    %v534 = vunpack.c.l.b16 %v258
    %v535 = vunpack.c.h.b16 %v258
    %v536 = vunpack.c.l.b16 %v259
    %v537 = vunpack.c.l.b16 %v260
    %v538 = vunpack.c.h.b16 %v260
    %v539 = vunpack.c.l.b16 %v261
    %v540 = vunpack.c.l.b16 %v262
    %v541 = vunpack.c.h.b16 %v262
    %v542 = vunpack.c.l.b16 %v263
    %v543 = vunpack.c.l.b16 %v264
    %v544 = vunpack.c.h.b16 %v264
    %v545 = vunpack.c.l.b16 %v265
    %v546 = vunpack.c.l.b16 %v266
    %v547 = vunpack.c.h.b16 %v266
    %v548 = vunpack.c.l.b16 %v267
    %v549 = vunpack.c.l.b16 %v268
    %v550 = vunpack.c.h.b16 %v268
    %v551 = vunpack.c.l.b16 %v269
    %v552 = vunpack.c.l.b16 %v270
    %v553 = vunpack.c.h.b16 %v270
    %v554 = vunpack.c.l.b16 %v271
    %v555 = vunpack.c.l.b16 %v272
    %v556 = vunpack.c.h.b16 %v272
    %v557 = vunpack.c.l.b16 %v273
    %v558 = vunpack.c.l.b16 %v274
    %v559 = vunpack.c.h.b16 %v274
    %v560 = vunpack.c.l.b16 %v275
    %v561 = vunpack.c.l.b16 %v276
    %v562 = vunpack.c.h.b16 %v276
    %v563 = vunpack.c.l.b16 %v277
    %v564 = vunpack.c.l.b16 %v278
    %v565 = vunpack.c.h.b16 %v278
    %v566 = vunpack.c.l.b16 %v279
    %v567 = vunpack.c.l.b16 %v280
    %v568 = vunpack.c.h.b16 %v280
    %v569 = vunpack.c.l.b16 %v281
    %v570 = vunpack.c.l.b16 %v282
    %v571 = vunpack.c.h.b16 %v282
    %v572 = vunpack.c.l.b16 %v283
    %v573 = vunpack.c.l.b16 %v284
    %v574 = vunpack.c.h.b16 %v284
    %v575 = vunpack.c.l.b16 %v285
    %v576 = vunpack.c.l.b16 %v286
    %v577 = vunpack.c.h.b16 %v286
    %v578 = vunpack.c.l.b16 %v287
    %v579 = vunpack.c.l.b16 %v288
    %v580 = vunpack.c.h.b16 %v288
    %v581 = vunpack.c.l.b16 %v289
    %v582 = vunpack.c.l.b16 %v290
    %v583 = vunpack.c.h.b16 %v290
    %v584 = vunpack.c.l.b16 %v291
    %v585 = vunpack.c.l.b16 %v292
    %v586 = vunpack.c.h.b16 %v292
    %v587 = vunpack.c.l.b16 %v293
    %v588 = vunpack.c.l.b16 %v294
    %v589 = vunpack.c.h.b16 %v294
    %v590 = vunpack.c.l.b16 %v295
    %v591 = vunpack.c.l.b16 %v296
    %v592 = vunpack.c.h.b16 %v296
    %v593 = vunpack.c.l.b16 %v297
    %v594 = vunpack.c.l.b16 %v298
    %v595 = vunpack.c.h.b16 %v298
    %v596 = vunpack.c.l.b16 %v299
    %v597 = vunpack.c.l.b16 %v300
    %v598 = vunpack.c.h.b16 %v300
    %v599 = vunpack.c.l.b16 %v301
    %v600 = vunpack.c.l.b16 %v302
    %v601 = vunpack.c.h.b16 %v302
    %v602 = vunpack.c.l.b16 %v303
    %v603 = vunpack.c.l.b16 %v304
    %v604 = vunpack.c.h.b16 %v304
    %v605 = vunpack.c.l.b16 %v305
    %v606 = vunpack.c.l.b16 %v306
    %v607 = vunpack.c.h.b16 %v306
    %v608 = vunpack.c.l.b16 %v307
    %v609 = vunpack.c.l.b16 %v308
    %v610 = vunpack.c.h.b16 %v308
    %v611 = vunpack.c.l.b16 %v309
    %v612 = vunpack.c.l.b16 %v310
    %v613 = vunpack.c.h.b16 %v310
    %v614 = vunpack.c.l.b16 %v311
    %v615 = vunpack.c.l.b16 %v312
    %v616 = vunpack.c.h.b16 %v312
    %v617 = vunpack.c.l.b16 %v313
    %v618 = vunpack.c.l.b16 %v314
    %v619 = vunpack.c.h.b16 %v314
    %v620 = vunpack.c.l.b16 %v315
    %v621 = vunpack.c.l.b16 %v316
    %v622 = vunpack.c.h.b16 %v316
    %v623 = vunpack.c.l.b16 %v317
    %v624 = vunpack.c.l.b16 %v318
    %v625 = vunpack.c.h.b16 %v318
    %v626 = vunpack.c.l.b16 %v319
    %v627 = vunpack.c.l.b16 %v320
    %v628 = vunpack.c.h.b16 %v320
    %v629 = vunpack.c.l.b16 %v321
    %v630 = vunpack.c.l.b16 %v322
    %v631 = vunpack.c.h.b16 %v322
    %v632 = vunpack.c.l.b16 %v323
    %v633 = vunpack.c.l.b16 %v324
    %v634 = vunpack.c.h.b16 %v324
    %v635 = vunpack.c.l.b16 %v325
    %v636 = vunpack.c.l.b16 %v326
    %v637 = vunpack.c.h.b16 %v326
    %v638 = vunpack.c.l.b16 %v327
    %v639 = vunpack.c.l.b16 %v328
    %v640 = vunpack.c.h.b16 %v328
    %v641 = vunpack.c.l.b16 %v329
    %v642 = vunpack.c.l.b16 %v330
    %v643 = vunpack.c.h.b16 %v330
    %v644 = vunpack.c.l.b16 %v331
    %v645 = vunpack.c.l.b16 %v332
    %v646 = vunpack.c.h.b16 %v332
    %v647 = vunpack.c.l.b16 %v333
    %v648 = vunpack.c.l.b16 %v334
    %v649 = vunpack.c.h.b16 %v334
    %v650 = vunpack.c.l.b16 %v335
    %v651 = vunpack.c.l.b16 %v336
    %v652 = vunpack.c.h.b16 %v336
    %v653 = vunpack.c.l.b16 %v337
    %v654 = vunpack.c.l.b16 %v338
    %v655 = vunpack.c.h.b16 %v338
    %v656 = vunpack.c.l.b16 %v339
    %v657 = vunpack.c.l.b16 %v340
    %v658 = vunpack.c.h.b16 %v340
    %v659 = vunpack.c.l.b16 %v341
    %v660 = vunpack.c.l.b16 %v342
    %v661 = vunpack.c.h.b16 %v342
    %v662 = vunpack.c.l.b16 %v343
    %v663 = vunpack.c.l.b16 %v344
    %v664 = vunpack.c.h.b16 %v344
    %v665 = vunpack.c.l.b16 %v345
    %v666 = vunpack.c.l.b16 %v346
    %v667 = vunpack.c.h.b16 %v346
    %v668 = vunpack.c.l.b16 %v347
    %v669 = vunpack.c.l.b16 %v348
    %v670 = vunpack.c.h.b16 %v348
    %v671 = vunpack.c.l.b16 %v349
    %v672 = vunpack.c.l.b16 %v350
    %v673 = vunpack.c.h.b16 %v350
    %v674 = vunpack.c.l.b16 %v351
    %v675 = vunpack.c.l.b16 %v352
    %v676 = vunpack.c.h.b16 %v352
    %v677 = vunpack.c.l.b16 %v353
    %v678 = vunpack.c.l.b16 %v354
    %v679 = vunpack.c.h.b16 %v354
    %v680 = vunpack.c.l.b16 %v355
    %v681 = vunpack.c.l.b16 %v356
    %v682 = vunpack.c.h.b16 %v356
    %v683 = vunpack.c.l.b16 %v357
    %v684 = vunpack.c.l.b16 %v358
    %v685 = vunpack.c.h.b16 %v358
    %v686 = vunpack.c.l.b16 %v359
    %v687 = vunpack.c.l.b16 %v360
    %v688 = vunpack.c.h.b16 %v360
    %v689 = vunpack.c.l.b16 %v361
    %v690 = vunpack.c.l.b16 %v362
    %v691 = vunpack.c.h.b16 %v362
    %v692 = vunpack.c.l.b16 %v363
    %v693 = vunpack.c.l.b16 %v364
    %v694 = vunpack.c.h.b16 %v364
    %v695 = vunpack.c.l.b16 %v365
    %v696 = vunpack.c.l.b16 %v366
    %v697 = vunpack.c.h.b16 %v366
    %v698 = vunpack.c.l.b16 %v367
    %v699 = vunpack.c.l.b16 %v368
    %v700 = vunpack.c.h.b16 %v368
    %v701 = vunpack.c.l.b16 %v369
    %v702 = vunpack.c.l.b16 %v370
    %v703 = vunpack.c.h.b16 %v370
    %v704 = vunpack.c.l.b16 %v371
    %v705 = vunpack.c.l.b16 %v372
    %v706 = vunpack.c.h.b16 %v372
    %v707 = vunpack.c.l.b16 %v373
    %v708 = vunpack.c.l.b16 %v374
    %v709 = vunpack.c.h.b16 %v374
    %v710 = vunpack.c.l.b16 %v375
    %v711 = vunpack.c.l.b16 %v376
    %v712 = vunpack.c.h.b16 %v376
    %v713 = vunpack.c.l.b16 %v377
    %v714 = vunpack.c.l.b16 %v378
    %v715 = vunpack.c.h.b16 %v378
    %v716 = vunpack.c.l.b16 %v379
    %v717 = vpack.c.b16 %v528, %v525
    %v718 = vpack.c.b16 %v529, %v526
    %v719 = vpack.c.b16 %v530, %v527
    %v720 = vpack.c.b16 %v534, %v531
    %v721 = vpack.c.b16 %v535, %v532
    %v722 = vpack.c.b16 %v536, %v533
    %v723 = vpack.c.b16 %v540, %v537
    %v724 = vpack.c.b16 %v541, %v538
    %v725 = vpack.c.b16 %v542, %v539
    %v726 = vpack.c.b16 %v546, %v543
    %v727 = vpack.c.b16 %v547, %v544
    %v728 = vpack.c.b16 %v548, %v545
    %v729 = vpack.c.b16 %v552, %v549
    %v730 = vpack.c.b16 %v553, %v550
    %v731 = vpack.c.b16 %v554, %v551
    %v732 = vpack.c.b16 %v558, %v555
    %v733 = vpack.c.b16 %v559, %v556
    %v734 = vpack.c.b16 %v560, %v557
    %v735 = vpack.c.b16 %v564, %v561
    %v736 = vpack.c.b16 %v565, %v562
    %v737 = vpack.c.b16 %v566, %v563
    %v738 = vpack.c.b16 %v570, %v567
    %v739 = vpack.c.b16 %v571, %v568
    %v740 = vpack.c.b16 %v572, %v569
    %v741 = vpack.c.b16 %v576, %v573
    %v742 = vpack.c.b16 %v577, %v574
    %v743 = vpack.c.b16 %v578, %v575
    %v744 = vpack.c.b16 %v582, %v579
    %v745 = vpack.c.b16 %v583, %v580
    %v746 = vpack.c.b16 %v584, %v581
    %v747 = vpack.c.b16 %v588, %v585
    %v748 = vpack.c.b16 %v589, %v586
    %v749 = vpack.c.b16 %v590, %v587
    %v750 = vpack.c.b16 %v594, %v591
    %v751 = vpack.c.b16 %v595, %v592
    %v752 = vpack.c.b16 %v596, %v593
    %v753 = vpack.c.b16 %v600, %v597
    %v754 = vpack.c.b16 %v601, %v598
    %v755 = vpack.c.b16 %v602, %v599
    %v756 = vpack.c.b16 %v606, %v603
    %v757 = vpack.c.b16 %v607, %v604
    %v758 = vpack.c.b16 %v608, %v605
    %v759 = vpack.c.b16 %v612, %v609
    %v760 = vpack.c.b16 %v613, %v610
    %v761 = vpack.c.b16 %v614, %v611
    %v762 = vpack.c.b16 %v618, %v615
    %v763 = vpack.c.b16 %v619, %v616
    %v764 = vpack.c.b16 %v620, %v617
    %v765 = vpack.c.b16 %v624, %v621
    %v766 = vpack.c.b16 %v625, %v622
    %v767 = vpack.c.b16 %v626, %v623
    %v768 = vpack.c.b16 %v630, %v627
    %v769 = vpack.c.b16 %v631, %v628
    %v770 = vpack.c.b16 %v632, %v629
    %v771 = vpack.c.b16 %v636, %v633
    %v772 = vpack.c.b16 %v637, %v634
    %v773 = vpack.c.b16 %v638, %v635
    %v774 = vpack.c.b16 %v642, %v639
    %v775 = vpack.c.b16 %v643, %v640
    %v776 = vpack.c.b16 %v644, %v641
    %v777 = vpack.c.b16 %v648, %v645
    %v778 = vpack.c.b16 %v649, %v646
    %v779 = vpack.c.b16 %v650, %v647
    %v780 = vpack.c.b16 %v654, %v651
    %v781 = vpack.c.b16 %v655, %v652
    %v782 = vpack.c.b16 %v656, %v653
    %v783 = vpack.c.b16 %v660, %v657
    %v784 = vpack.c.b16 %v661, %v658
    %v785 = vpack.c.b16 %v662, %v659
    %v786 = vpack.c.b16 %v666, %v663
    %v787 = vpack.c.b16 %v667, %v664
    %v788 = vpack.c.b16 %v668, %v665
    %v789 = vpack.c.b16 %v672, %v669
    %v790 = vpack.c.b16 %v673, %v670
    %v791 = vpack.c.b16 %v674, %v671
    %v792 = vpack.c.b16 %v678, %v675
    %v793 = vpack.c.b16 %v679, %v676
    %v794 = vpack.c.b16 %v680, %v677
    %v795 = vpack.c.b16 %v684, %v681
    %v796 = vpack.c.b16 %v685, %v682
    %v797 = vpack.c.b16 %v686, %v683
    %v798 = vpack.c.b16 %v690, %v687
    %v799 = vpack.c.b16 %v691, %v688
    %v800 = vpack.c.b16 %v692, %v689
    %v801 = vpack.c.b16 %v696, %v693
    %v802 = vpack.c.b16 %v697, %v694
    %v803 = vpack.c.b16 %v698, %v695
    %v804 = vpack.c.b16 %v702, %v699
    %v805 = vpack.c.b16 %v703, %v700
    %v806 = vpack.c.b16 %v704, %v701
    %v807 = vpack.c.b16 %v708, %v705
    %v808 = vpack.c.b16 %v709, %v706
    %v809 = vpack.c.b16 %v710, %v707
    %v810 = vpack.c.b16 %v714, %v711
    %v811 = vpack.c.b16 %v715, %v712
    %v812 = vpack.c.b16 %v716, %v713
    %909 = vmatprep.subr.bf16.mxu0 %v718
    %910 = vmatpush1.bf16.msra.mxu0 %v717
    %911 = vmatprep.subr.bf16.mxu0 %v721
    %912 = vmatpush1.bf16.msra.mxu0 %v720
    %913 = vmatprep.subr.bf16.mxu0 %v724
    %914 = vmatpush1.bf16.msra.mxu0 %v723
    %915 = vmatprep.subr.bf16.mxu0 %v727
    %916 = vmatpush1.bf16.msra.mxu0 %v726
    %917 = vmatprep.subr.bf16.mxu0 %v730
    %918 = vmatpush1.bf16.msra.mxu0 %v729
    %919 = vmatprep.subr.bf16.mxu0 %v733
    %920 = vmatpush1.bf16.msra.mxu0 %v732
    %921 = vmatprep.subr.bf16.mxu0 %v736
    %922 = vmatpush1.bf16.msra.mxu0 %v735
    %923 = vmatprep.subr.bf16.mxu0 %v739
    %924 = vmatpush1.bf16.msra.mxu0 %v738
    %925 = vmatprep.subr.bf16.mxu0 %v742
    %926 = vmatpush1.bf16.msra.mxu0 %v741
    %927 = vmatprep.subr.bf16.mxu0 %v745
    %928 = vmatpush1.bf16.msra.mxu0 %v744
    %929 = vmatprep.subr.bf16.mxu0 %v748
    %930 = vmatpush1.bf16.msra.mxu0 %v747
    %931 = vmatprep.subr.bf16.mxu0 %v751
    %932 = vmatpush1.bf16.msra.mxu0 %v750
    %933 = vmatprep.subr.bf16.mxu0 %v754
    %934 = vmatpush1.bf16.msra.mxu0 %v753
    %935 = vmatprep.subr.bf16.mxu0 %v757
    %936 = vmatpush1.bf16.msra.mxu0 %v756
    %937 = vmatprep.subr.bf16.mxu0 %v760
    %938 = vmatpush1.bf16.msra.mxu0 %v759
    %939 = vmatprep.subr.bf16.mxu0 %v763
    %940 = vmatpush1.bf16.msra.mxu0 %v762
    %941 = vmatprep.mubr.bf16.mxu0 %v245
    %942 = vmatmul.mubr.bf16.gmra.mrb[0].mxu0 %v244
    %v943 = vpop.f32.mrb[0].mxu0
    %v944 = vadd.f32 %v385, %v943
    %v945 = vpop.f32.mrb[0].mxu0
    %v946 = vadd.f32 %v389, %v945
    %v947 = vpop.f32.mrb[0].mxu0
    %v948 = vadd.f32 %v385, %v947
    %v949 = vpop.f32.mrb[0].mxu0
    %v950 = vadd.f32 %v389, %v949
    %951 = vmatprep.mubr.bf16.mxu0 %v249
    %952 = vmatmul.mubr.bf16.gmra.mrb[0].mxu0 %v248
    %v953 = vpop.f32.mrb[0].mxu0
    %v954 = vadd.f32 %v385, %v953
    %v955 = vpop.f32.mrb[0].mxu0
    %v956 = vadd.f32 %v389, %v955
    %v957 = vpop.f32.mrb[0].mxu0
    %v958 = vadd.f32 %v385, %v957
    %v959 = vpop.f32.mrb[0].mxu0
    %v960 = vadd.f32 %v389, %v959
    %961 = vdwg.mxu0
    %962 = vmatprep.subr.bf16.mxu0 %v766
    %963 = vmatpush1.bf16.msra.mxu0 %v765
    %964 = vmatprep.subr.bf16.mxu0 %v769
    %965 = vmatpush1.bf16.msra.mxu0 %v768
    %966 = vmatprep.subr.bf16.mxu0 %v772
    %967 = vmatpush1.bf16.msra.mxu0 %v771
    %968 = vmatprep.subr.bf16.mxu0 %v775
    %969 = vmatpush1.bf16.msra.mxu0 %v774
    %970 = vmatprep.subr.bf16.mxu0 %v778
    %971 = vmatpush1.bf16.msra.mxu0 %v777
    %972 = vmatprep.subr.bf16.mxu0 %v781
    %973 = vmatpush1.bf16.msra.mxu0 %v780
    %974 = vmatprep.subr.bf16.mxu0 %v784
    %975 = vmatpush1.bf16.msra.mxu0 %v783
    %976 = vmatprep.subr.bf16.mxu0 %v787
    %977 = vmatpush1.bf16.msra.mxu0 %v786
    %978 = vmatprep.subr.bf16.mxu0 %v790
    %979 = vmatpush1.bf16.msra.mxu0 %v789
    %980 = vmatprep.subr.bf16.mxu0 %v793
    %981 = vmatpush1.bf16.msra.mxu0 %v792
    %982 = vmatprep.subr.bf16.mxu0 %v796
    %983 = vmatpush1.bf16.msra.mxu0 %v795
    %984 = vmatprep.subr.bf16.mxu0 %v799
    %985 = vmatpush1.bf16.msra.mxu0 %v798
    %986 = vmatprep.subr.bf16.mxu0 %v802
    %987 = vmatpush1.bf16.msra.mxu0 %v801
    %988 = vmatprep.subr.bf16.mxu0 %v805
    %989 = vmatpush1.bf16.msra.mxu0 %v804
    %990 = vmatprep.subr.bf16.mxu0 %v808
    %991 = vmatpush1.bf16.msra.mxu0 %v807
    %992 = vmatprep.subr.bf16.mxu0 %v811
    %993 = vmatpush1.bf16.msra.mxu0 %v810
    %994 = vmatprep.mubr.bf16.mxu0 %v247
    %995 = vmatmul.mubr.bf16.gmra.mrb[0].mxu0 %v246
    %v996 = vpop.f32.mrb[0].mxu0
    %v997 = vadd.f32 %v944, %v996
    %v998 = vpop.f32.mrb[0].mxu0
    %v999 = vadd.f32 %v946, %v998
    %v1000 = vpop.f32.mrb[0].mxu0
    %v1001 = vadd.f32 %v948, %v1000
    %v1002 = vpop.f32.mrb[0].mxu0
    %v1003 = vadd.f32 %v950, %v1002
    %1004 = vmatprep.mubr.bf16.mxu0 %v251
    %1005 = vmatmul.mubr.bf16.gmra.mrb[0].mxu0 %v250
    %v1006 = vpop.f32.mrb[0].mxu0
    %v1007 = vadd.f32 %v954, %v1006
    %v1008 = vpop.f32.mrb[0].mxu0
    %v1009 = vadd.f32 %v956, %v1008
    %v1010 = vpop.f32.mrb[0].mxu0
    %v1011 = vadd.f32 %v958, %v1010
    %v1012 = vpop.f32.mrb[0].mxu0
    %v1013 = vadd.f32 %v960, %v1012
    %1014 = vdwg.mxu0
    %1015 = vmatprep.subr.bf16.mxu0 0
    %1016 = vmatpush1.bf16.msra.mxu0 %v719
    %1017 = vmatprep.subr.bf16.mxu0 0
    %1018 = vmatpush1.bf16.msra.mxu0 %v722
    %1019 = vmatprep.subr.bf16.mxu0 0
    %1020 = vmatpush1.bf16.msra.mxu0 %v725
    %1021 = vmatprep.subr.bf16.mxu0 0
    %1022 = vmatpush1.bf16.msra.mxu0 %v728
    %1023 = vmatprep.subr.bf16.mxu0 0
    %1024 = vmatpush1.bf16.msra.mxu0 %v731
    %1025 = vmatprep.subr.bf16.mxu0 0
    %1026 = vmatpush1.bf16.msra.mxu0 %v734
    %1027 = vmatprep.subr.bf16.mxu0 0
    %1028 = vmatpush1.bf16.msra.mxu0 %v737
    %1029 = vmatprep.subr.bf16.mxu0 0
    %1030 = vmatpush1.bf16.msra.mxu0 %v740
    %1031 = vmatprep.subr.bf16.mxu0 0
    %1032 = vmatpush1.bf16.msra.mxu0 %v743
    %1033 = vmatprep.subr.bf16.mxu0 0
    %1034 = vmatpush1.bf16.msra.mxu0 %v746
    %1035 = vmatprep.subr.bf16.mxu0 0
    %1036 = vmatpush1.bf16.msra.mxu0 %v749
    %1037 = vmatprep.subr.bf16.mxu0 0
    %1038 = vmatpush1.bf16.msra.mxu0 %v752
    %1039 = vmatprep.subr.bf16.mxu0 0
    %1040 = vmatpush1.bf16.msra.mxu0 %v755
    %1041 = vmatprep.subr.bf16.mxu0 0
    %1042 = vmatpush1.bf16.msra.mxu0 %v758
    %1043 = vmatprep.subr.bf16.mxu0 0
    %1044 = vmatpush1.bf16.msra.mxu0 %v761
    %1045 = vmatprep.subr.bf16.mxu0 0
    %1046 = vmatpush1.bf16.msra.mxu0 %v764
    %1047 = vmatprep.mubr.bf16.mxu0 %v245
    %1048 = vmatmul.mubr.bf16.gmra.mrb[0].mxu0 %v244
    %v1049 = vpop.f32.mrb[0].mxu0
    %v1050 = vadd.f32 %v393, %v1049
    %v1051 = vpop.f32.mrb[0].mxu0
    %v1052 = vpop.f32.mrb[0].mxu0
    %v1053 = vadd.f32 %v393, %v1052
    %v1054 = vpop.f32.mrb[0].mxu0
    %1055 = vmatprep.mubr.bf16.mxu0 %v249
    %1056 = vmatmul.mubr.bf16.gmra.mrb[0].mxu0 %v248
    %v1057 = vpop.f32.mrb[0].mxu0
    %v1058 = vadd.f32 %v393, %v1057
    %v1059 = vpop.f32.mrb[0].mxu0
    %v1060 = vpop.f32.mrb[0].mxu0
    %v1061 = vadd.f32 %v393, %v1060
    %v1062 = vpop.f32.mrb[0].mxu0
    %1063 = vdwg.mxu0
    %1064 = vmatprep.subr.bf16.mxu0 0
    %1065 = vmatpush1.bf16.msra.mxu0 %v767
    %1066 = vmatprep.subr.bf16.mxu0 0
    %1067 = vmatpush1.bf16.msra.mxu0 %v770
    %1068 = vmatprep.subr.bf16.mxu0 0
    %1069 = vmatpush1.bf16.msra.mxu0 %v773
    %1070 = vmatprep.subr.bf16.mxu0 0
    %1071 = vmatpush1.bf16.msra.mxu0 %v776
    %1072 = vmatprep.subr.bf16.mxu0 0
    %1073 = vmatpush1.bf16.msra.mxu0 %v779
    %1074 = vmatprep.subr.bf16.mxu0 0
    %1075 = vmatpush1.bf16.msra.mxu0 %v782
    %1076 = vmatprep.subr.bf16.mxu0 0
    %1077 = vmatpush1.bf16.msra.mxu0 %v785
    %1078 = vmatprep.subr.bf16.mxu0 0
    %1079 = vmatpush1.bf16.msra.mxu0 %v788
    %1080 = vmatprep.subr.bf16.mxu0 0
    %1081 = vmatpush1.bf16.msra.mxu0 %v791
    %1082 = vmatprep.subr.bf16.mxu0 0
    %1083 = vmatpush1.bf16.msra.mxu0 %v794
    %1084 = vmatprep.subr.bf16.mxu0 0
    %1085 = vmatpush1.bf16.msra.mxu0 %v797
    %1086 = vmatprep.subr.bf16.mxu0 0
    %1087 = vmatpush1.bf16.msra.mxu0 %v800
    %1088 = vmatprep.subr.bf16.mxu0 0
    %1089 = vmatpush1.bf16.msra.mxu0 %v803
    %1090 = vmatprep.subr.bf16.mxu0 0
    %1091 = vmatpush1.bf16.msra.mxu0 %v806
    %1092 = vmatprep.subr.bf16.mxu0 0
    %1093 = vmatpush1.bf16.msra.mxu0 %v809
    %1094 = vmatprep.subr.bf16.mxu0 0
    %1095 = vmatpush1.bf16.msra.mxu0 %v812
    %1096 = vmatprep.mubr.bf16.mxu0 %v247
    %1097 = vmatmul.mubr.bf16.gmra.mrb[0].mxu0 %v246
    %v1098 = vpop.f32.mrb[0].mxu0
    %v1099 = vadd.f32 %v1050, %v1098
    %v1100 = vpop.f32.mrb[0].mxu0
    %v1101 = vpop.f32.mrb[0].mxu0
    %v1102 = vadd.f32 %v1053, %v1101
    %v1103 = vpop.f32.mrb[0].mxu0
    %1104 = vmatprep.mubr.bf16.mxu0 %v251
    %1105 = vmatmul.mubr.bf16.gmra.mrb[0].mxu0 %v250
    %v1106 = vpop.f32.mrb[0].mxu0
    %v1107 = vadd.f32 %v1058, %v1106
    %v1108 = vpop.f32.mrb[0].mxu0
    %v1109 = vpop.f32.mrb[0].mxu0
    %v1110 = vadd.f32 %v1061, %v1109
    %v1111 = vpop.f32.mrb[0].mxu0
    %1112 = vdwg.mxu0
    %v1113 = vmax.f32 %v997, 0.0
    %v1114 = vmax.f32 %v999, 0.0
    %v1115 = vmax.f32 %v1099, 0.0
    %v1116 = vmax.f32 %v1001, 0.0
    %v1117 = vmax.f32 %v1003, 0.0
    %v1118 = vmax.f32 %v1102, 0.0
    %v1119 = vmax.f32 %v1007, 0.0
    %v1120 = vmax.f32 %v1009, 0.0
    %v1121 = vmax.f32 %v1107, 0.0
    %v1122 = vmax.f32 %v1011, 0.0
    %v1123 = vmax.f32 %v1013, 0.0
    %v1124 = vmax.f32 %v1110, 0.0
    %v1125 = vld [vmem:[%s5] sm:$0x7]
    %v1126 = vpack.c.bf16 %v1116, %v1113
    %v1127 = vpack.c.bf16 %v1117, %v1114
    %v1128 = vpack.c.bf16 %v1118, %v1115
    %v1129 = vpack.c.bf16 %v1122, %v1119
    %v1130 = vpack.c.bf16 %v1123, %v1120
    %v1131 = vpack.c.bf16 %v1124, %v1121
    %s1132 = sld [smem:[#allocation2]]
    %v1133 = vstv %s1132
    %v1136 = vunpack.c.l.s4 1966171168
    %v1137 = vunpack.c.0.s8 %v1136
    %v1138 = vlaneseq
    %v1139 = vshrl.u32 %v1138, 7
    %v1140 = vsub.s32 %v1137, %v1139
    %v1141 = vrot.slane %v1125, %v1140
    %v1142 = vcombine.high %v1141, %v1141
    %v1144 = vunpack.c.l.s4 1966171168
    %v1145 = vunpack.c.0.s8 %v1144
    %v1146 = vlaneseq
    %v1147 = vshrl.u32 %v1146, 7
    %v1148 = vsub.s32 %v1145, %v1147
    %v1149 = vrot.slane %v1141, %v1148
    %v1151 = vunpack.c.l.s4 1966171168
    %v1152 = vunpack.c.0.s8 %v1151
    %v1153 = vlaneseq
    %v1154 = vshrl.u32 %v1153, 7
    %v1155 = vsub.s32 %v1152, %v1154
    %v1156 = vrot.slane %v1142, %v1155
    %v1157 = vcombine.high %v1149, %v1149
    %1161 = vmatprep.subr.bf16.mxu0 %v1127
    %1162 = vmatpush1.bf16.xpose.msra.mxu0 %v1126
    %1163 = vmatprep.subr.bf16.mxu0 %v1130
    %1164 = vmatpush1.bf16.xpose.msra.mxu0 %v1129
    %1165 = vmatprep.subr.bf16.mxu0 0
    %1166 = vmatpush1.bf16.xpose.msra.mxu0 0
    %1167 = vmatprep.subr.bf16.mxu0 0
    %1168 = vmatpush1.bf16.xpose.msra.mxu0 0
    %1169 = vmatprep.subr.bf16.mxu0 0
    %1170 = vmatpush1.bf16.xpose.msra.mxu0 0
    %1171 = vmatprep.subr.bf16.mxu0 0
    %1172 = vmatpush1.bf16.xpose.msra.mxu0 0
    %1173 = vmatprep.subr.bf16.mxu0 0
    %1174 = vmatpush1.bf16.xpose.msra.mxu0 0
    %1175 = vmatprep.subr.bf16.mxu0 0
    %1176 = vmatpush1.bf16.xpose.msra.mxu0 0
    %1177 = vmatprep.subr.bf16.mxu0 0
    %1178 = vmatpush1.bf16.xpose.msra.mxu0 0
    %1179 = vmatprep.subr.bf16.mxu0 0
    %1180 = vmatpush1.bf16.xpose.msra.mxu0 0
    %1181 = vmatprep.subr.bf16.mxu0 0
    %1182 = vmatpush1.bf16.xpose.msra.mxu0 0
    %1183 = vmatprep.subr.bf16.mxu0 0
    %1184 = vmatpush1.bf16.xpose.msra.mxu0 0
    %1185 = vmatprep.subr.bf16.mxu0 0
    %1186 = vmatpush1.bf16.xpose.msra.mxu0 0
    %1187 = vmatprep.subr.bf16.mxu0 0
    %1188 = vmatpush1.bf16.xpose.msra.mxu0 0
    %1189 = vmatprep.subr.bf16.mxu0 0
    %1190 = vmatpush1.bf16.xpose.msra.mxu0 0
    %1191 = vmatprep.subr.bf16.mxu0 0
    %1192 = vmatpush1.bf16.xpose.msra.mxu0 0
    %1193 = vmatprep.mubr.bf16.mxu0 %v1156
    %1194 = vmatmul.mubr.bf16.gmra.mrb[0].mxu0 %v1149
    %v1195 = vpop.f32.mrb[0].mxu0
    %v1196 = vadd.f32 %v1133, %v1195
    %v1197 = vpop.f32.mrb[0].mxu0
    %v1198 = vpop.f32.mrb[0].mxu0
    %v1199 = vpop.f32.mrb[0].mxu0
    %1200 = vdwg.mxu0
    %1201 = vmatprep.subr.bf16.mxu0 0
    %1202 = vmatpush1.bf16.xpose.msra.mxu0 %v1128
    %1203 = vmatprep.subr.bf16.mxu0 0
    %1204 = vmatpush1.bf16.xpose.msra.mxu0 %v1131
    %1205 = vmatprep.subr.bf16.mxu0 0
    %1206 = vmatpush1.bf16.xpose.msra.mxu0 0
    %1207 = vmatprep.subr.bf16.mxu0 0
    %1208 = vmatpush1.bf16.xpose.msra.mxu0 0
    %1209 = vmatprep.subr.bf16.mxu0 0
    %1210 = vmatpush1.bf16.xpose.msra.mxu0 0
    %1211 = vmatprep.subr.bf16.mxu0 0
    %1212 = vmatpush1.bf16.xpose.msra.mxu0 0
    %1213 = vmatprep.subr.bf16.mxu0 0
    %1214 = vmatpush1.bf16.xpose.msra.mxu0 0
    %1215 = vmatprep.subr.bf16.mxu0 0
    %1216 = vmatpush1.bf16.xpose.msra.mxu0 0
    %1217 = vmatprep.subr.bf16.mxu0 0
    %1218 = vmatpush1.bf16.xpose.msra.mxu0 0
    %1219 = vmatprep.subr.bf16.mxu0 0
    %1220 = vmatpush1.bf16.xpose.msra.mxu0 0
    %1221 = vmatprep.subr.bf16.mxu0 0
    %1222 = vmatpush1.bf16.xpose.msra.mxu0 0
    %1223 = vmatprep.subr.bf16.mxu0 0
    %1224 = vmatpush1.bf16.xpose.msra.mxu0 0
    %1225 = vmatprep.subr.bf16.mxu0 0
    %1226 = vmatpush1.bf16.xpose.msra.mxu0 0
    %1227 = vmatprep.subr.bf16.mxu0 0
    %1228 = vmatpush1.bf16.xpose.msra.mxu0 0
    %1229 = vmatprep.subr.bf16.mxu0 0
    %1230 = vmatpush1.bf16.xpose.msra.mxu0 0
    %1231 = vmatprep.subr.bf16.mxu0 0
    %1232 = vmatpush1.bf16.xpose.msra.mxu0 0
    %1233 = vmatprep.mubr.bf16.mxu0 0
    %1234 = vmatmul.mubr.bf16.gmra.mrb[0].mxu0 %v1157
    %v1235 = vpop.f32.mrb[0].mxu0
    %v1236 = vadd.f32 %v1196, %v1235
    %v1237 = vpop.f32.mrb[0].mxu0
    %v1238 = vpop.f32.mrb[0].mxu0
    %v1239 = vpop.f32.mrb[0].mxu0
    %1240 = vdwg.mxu0
    %vm1241 = vcmask 253952
    %1242 = vst.msk [vmem:[#allocation6] sm:$0x1] %vm1241, %v1236
    // Predicated region
    $region34: #{critic_forward.1} parent=1 // pred_check
      _
    $region35: #{critic_forward.1} parent=1 // pred_check_branch
      %1244 = sbr.rel (0) target = $region37
    $region36: #{critic_forward.1} parent=1 // pred_region
      %s1246 = ssub.s32 16, 16
      %1247 = vsyncadd [#allocation5], %s1246
      %s1249 = sshll.u32 [#allocation6], 4
      %s1250 = int_to_ptr.vmem [resolvable:$true] %s1249
      %1252 = dma.vmem_to_hbm [thread:$0]  %s1250, 16, %s7, [#allocation5]
    $region37: #{critic_forward.1} parent=1 // pred_fallthru
      _
    // Predicated region
    $region38: #{critic_forward.1} parent=1 // pred_check
      _
    $region39: #{critic_forward.1} parent=1 // pred_check_branch
      %1254 = sbr.rel (0) target = $region41
    $region40: #{critic_forward.1} parent=1 // pred_region
      %1255 = dma.done [#allocation5], 16
    $region41: #{critic_forward.1} parent=1 // pred_fallthru
      _
    %1256 = vsyncpa [#allocation4], 1
    %1257 = vsyncpa [#allocation5], 1

</llo_original>
